<compile_context>
chip_gen: v6e
topology: v6e:2x2x1
jax: 0.10.0
libtpu: 0.0.40
codegen_flags: <defaults>
</compile_context>

<pallas_src>
import jax
import jax.numpy as jnp
from jax.experimental import pallas as pl
from jax.experimental.pallas import tpu as pltpu


def _attention_kernel(q_ref, vt_ref, v_ref, ctx_ref, attn_ref):
    # q_ref: (TQ, D), vt_ref: (D, K), v_ref: (K, D)
    q = q_ref[...]
    vt = vt_ref[...]
    v = v_ref[...]

    # score = q @ v^T  (MXU, f32 accumulation). vt is pre-transposed -> lane-aligned.
    score = jnp.dot(q, vt, preferred_element_type=jnp.float32)  # (TQ, K)

    # Numerically-stable softmax over the K (lane) axis, all math in f32.
    # Exact normalization (no approx reciprocal) to match the reference softmax.
    m = jnp.max(score, axis=-1, keepdims=True)
    e = jnp.exp(score - m)
    denom = jnp.sum(e, axis=-1, keepdims=True)
    attn = e / denom

    # Cast once; reuse for both the store and the second matmul.
    attn_out = attn.astype(attn_ref.dtype)
    attn_ref[...] = attn_out

    # context = attn @ v  (MXU, f32 accumulation)
    ctx = jnp.dot(attn_out.astype(v.dtype), v, preferred_element_type=jnp.float32)
    ctx_ref[...] = ctx.astype(ctx_ref.dtype)


def _pick_q_tile(q):
    # MXU-friendly tile sizes: 256 for v6e/v7x, 128 for v5e; fall back to full Q
    # for small / non-divisible sequences (block == full dim is always legal).
    for tq in (256, 128):
        if q % tq == 0:
            return tq
    return q


def dot_product_attention(query, value, *, tq=None):
    """query: (B, Q, D), value: (B, K, D) -> (context (B, Q, D), attn (B, Q, K))."""
    B, Q, D = query.shape
    Bv, K, Dv = value.shape
    assert B == Bv and D == Dv, "query/value batch and feature dims must match"

    if tq is None:
        tq = _pick_q_tile(Q)
    assert Q % tq == 0
    n_q = Q // tq

    # One-time transpose in the wrapper (plain XLA op) so the kernel never has to
    # transpose V on the XLU every grid step.
    value_t = jnp.swapaxes(value, 1, 2)  # (B, D, K)

    out_shapes = (
        jax.ShapeDtypeStruct((B, Q, D), query.dtype),   # context
        jax.ShapeDtypeStruct((B, Q, K), query.dtype),   # attn_weights
    )

    # VMEM budget: double-buffered blocks (q, vt, v, ctx, attn), sized to the tiles.
    itemsize = jnp.dtype(query.dtype).itemsize
    block_bytes = (tq * D + D * K + K * D + tq * D + tq * K) * itemsize
    vmem_limit = int(min(max(4 * block_bytes, 32 * 1024 * 1024), 64 * 1024 * 1024))

    grid_spec = pltpu.PrefetchScalarGridSpec(
        num_scalar_prefetch=0,
        grid=(B, n_q),
        in_specs=[
            # Leading batch dim is squeezed out of the kernel view.
            pl.BlockSpec((None, tq, D), lambda b, qi: (b, qi, 0)),   # query tile
            pl.BlockSpec((None, D, K), lambda b, qi: (b, 0, 0)),     # V^T (resident across Q tiles)
            pl.BlockSpec((None, K, D), lambda b, qi: (b, 0, 0)),     # V   (resident across Q tiles)
        ],
        out_specs=[
            pl.BlockSpec((None, tq, D), lambda b, qi: (b, qi, 0)),   # context tile
            pl.BlockSpec((None, tq, K), lambda b, qi: (b, qi, 0)),   # attn tile
        ],
    )

    return pl.pallas_call(
        _attention_kernel,
        out_shape=out_shapes,
        grid_spec=grid_spec,
        compiler_params=pltpu.CompilerParams(
            dimension_semantics=("parallel", "parallel"),
            vmem_limit_bytes=vmem_limit,
        ),
    )(query, value_t, value)


def _reference(query, value):
    score = jnp.einsum("bqd,bkd->bqk", query, value)
    attn = jax.nn.softmax(score, axis=-1)
    ctx = jnp.einsum("bqk,bkd->bqd", attn, value)
    return ctx, attn


if __name__ == "__main__":
    key = jax.random.PRNGKey(0)
    kq, kv = jax.random.split(key)

    B, Q, K, D = 2, 8, 8, 32  # small shapes consistent with bmm semantics
    query = jax.random.normal(kq, (B, Q, D), dtype=jnp.float32)
    value = jax.random.normal(kv, (B, K, D), dtype=jnp.float32)

    context, attn_weights = dot_product_attention(query, value)
    context = jax.block_until_ready(context)
    attn_weights = jax.block_until_ready(attn_weights)

    # Sanity check against pure-JAX reference (exact softmax division in the
    # kernel, so tolerance only has to cover matmul accumulation order).
    ref_ctx, ref_attn = _reference(query, value)
    assert jnp.allclose(context, ref_ctx, atol=1e-3, rtol=1e-3)
    assert jnp.allclose(attn_weights, ref_attn, atol=1e-3, rtol=1e-3)

    print("KERNEL_OK")
</pallas_src>

<mosaic_0001>
module attributes {stable_mosaic.version = 11 : i64} {
  func.func @_attention_kernel(%arg0: i32, %arg1: i32, %arg2: memref<1x8x32xf32, #tpu.memory_space<vmem>>, %arg3: memref<1x32x8xf32, #tpu.memory_space<vmem>>, %arg4: memref<1x8x32xf32, #tpu.memory_space<vmem>>, %arg5: memref<1x8x32xf32, #tpu.memory_space<vmem>>, %arg6: memref<1x8x8xf32, #tpu.memory_space<vmem>>) attributes {dimension_semantics = [#tpu.dimension_semantics<parallel>, #tpu.dimension_semantics<parallel>], iteration_bounds = array<i64: 2, 1>, scalar_prefetch = 0 : i64, scratch_operands = 0 : i64, tpu.core_type = #tpu.core_type<tc>, window_params = [{transform_indices = @transform_0, window_bounds = array<i64: 1, 8, 32>}, {transform_indices = @transform_1, window_bounds = array<i64: 1, 32, 8>}, {transform_indices = @transform_2, window_bounds = array<i64: 1, 8, 32>}, {transform_indices = @transform_3, window_bounds = array<i64: 1, 8, 32>}, {transform_indices = @transform_4, window_bounds = array<i64: 1, 8, 8>}]} {
    %c0 = arith.constant 0 : index
    %c0_0 = arith.constant 0 : index
    %c0_1 = arith.constant 0 : index
    %0 = vector.load %arg2[%c0, %c0_0, %c0_1] : memref<1x8x32xf32, #tpu.memory_space<vmem>>, vector<1x8x32xf32>
    %1 = vector.shape_cast %0 : vector<1x8x32xf32> to vector<8x32xf32>
    %c0_2 = arith.constant 0 : index
    %c0_3 = arith.constant 0 : index
    %c0_4 = arith.constant 0 : index
    %2 = vector.load %arg3[%c0_2, %c0_3, %c0_4] : memref<1x32x8xf32, #tpu.memory_space<vmem>>, vector<1x32x8xf32>
    %3 = vector.shape_cast %2 : vector<1x32x8xf32> to vector<32x8xf32>
    %c0_5 = arith.constant 0 : index
    %c0_6 = arith.constant 0 : index
    %c0_7 = arith.constant 0 : index
    %4 = vector.load %arg4[%c0_5, %c0_6, %c0_7] : memref<1x8x32xf32, #tpu.memory_space<vmem>>, vector<1x8x32xf32>
    %5 = vector.shape_cast %4 : vector<1x8x32xf32> to vector<8x32xf32>
    %cst = arith.constant dense<0.000000e+00> : vector<8x8xf32>
    %6 = tpu.matmul %1, %3, %cst {dimension_numbers = #tpu.dot_dimension_numbers<[1], [0], [0], [1], [0, 0, 1, 1], [], []>} : vector<8x32xf32>, vector<32x8xf32>, vector<8x8xf32> -> vector<8x8xf32>
    %cst_8 = arith.constant dense<0xFF800000> : vector<8xf32>
    %7 = vector.multi_reduction <maximumf>, %6, %cst_8 [1] : vector<8x8xf32> to vector<8xf32>
    %8 = vector.shape_cast %7 : vector<8xf32> to vector<8x1xf32>
    %9 = vector.broadcast %8 : vector<8x1xf32> to vector<8x8xf32>
    %10 = arith.subf %6, %9 : vector<8x8xf32>
    %11 = math.exp %10 : vector<8x8xf32>
    %cst_9 = arith.constant dense<0.000000e+00> : vector<8xf32>
    %12 = vector.multi_reduction <add>, %11, %cst_9 [1] : vector<8x8xf32> to vector<8xf32>
    %13 = vector.shape_cast %12 : vector<8xf32> to vector<8x1xf32>
    %14 = vector.broadcast %13 : vector<8x1xf32> to vector<8x8xf32>
    %15 = arith.divf %11, %14 : vector<8x8xf32>
    %c0_10 = arith.constant 0 : index
    %c0_11 = arith.constant 0 : index
    %c0_12 = arith.constant 0 : index
    %16 = vector.load %arg6[%c0_10, %c0_11, %c0_12] : memref<1x8x8xf32, #tpu.memory_space<vmem>>, vector<1x8x8xf32>
    %17 = vector.shape_cast %16 : vector<1x8x8xf32> to vector<8x8xf32>
    %18 = vector.shape_cast %15 : vector<8x8xf32> to vector<1x8x8xf32>
    tpu.vector_store %arg6[%c0_10, %c0_11, %c0_12], %18 {strides = array<i32>} : memref<1x8x8xf32, #tpu.memory_space<vmem>>, vector<1x8x8xf32>,
    %cst_13 = arith.constant dense<0.000000e+00> : vector<8x32xf32>
    %19 = tpu.matmul %15, %5, %cst_13 {dimension_numbers = #tpu.dot_dimension_numbers<[1], [0], [0], [1], [0, 0, 1, 1], [], []>} : vector<8x8xf32>, vector<8x32xf32>, vector<8x32xf32> -> vector<8x32xf32>
    %c0_14 = arith.constant 0 : index
    %c0_15 = arith.constant 0 : index
    %c0_16 = arith.constant 0 : index
    %20 = vector.load %arg5[%c0_14, %c0_15, %c0_16] : memref<1x8x32xf32, #tpu.memory_space<vmem>>, vector<1x8x32xf32>
    %21 = vector.shape_cast %20 : vector<1x8x32xf32> to vector<8x32xf32>
    %22 = vector.shape_cast %19 : vector<8x32xf32> to vector<1x8x32xf32>
    tpu.vector_store %arg5[%c0_14, %c0_15, %c0_16], %22 {strides = array<i32>} : memref<1x8x32xf32, #tpu.memory_space<vmem>>, vector<1x8x32xf32>,
    return
  }
  func.func @transform_0(%arg0: i32, %arg1: i32) -> (i32, i32, i32) {
    %c0_i32 = arith.constant 0 : i32
    %c0_i32_0 = arith.constant 0 : i32
    return %arg0, %arg1, %c0_i32 : i32, i32, i32
  }
  func.func @transform_1(%arg0: i32, %arg1: i32) -> (i32, i32, i32) {
    %c0_i32 = arith.constant 0 : i32
    %c0_i32_0 = arith.constant 0 : i32
    %c0_i32_1 = arith.constant 0 : i32
    return %arg0, %c0_i32, %c0_i32_0 : i32, i32, i32
  }
  func.func @transform_2(%arg0: i32, %arg1: i32) -> (i32, i32, i32) {
    %c0_i32 = arith.constant 0 : i32
    %c0_i32_0 = arith.constant 0 : i32
    %c0_i32_1 = arith.constant 0 : i32
    return %arg0, %c0_i32, %c0_i32_0 : i32, i32, i32
  }
  func.func @transform_3(%arg0: i32, %arg1: i32) -> (i32, i32, i32) {
    %c0_i32 = arith.constant 0 : i32
    %c0_i32_0 = arith.constant 0 : i32
    return %arg0, %arg1, %c0_i32 : i32, i32, i32
  }
  func.func @transform_4(%arg0: i32, %arg1: i32) -> (i32, i32, i32) {
    %c0_i32 = arith.constant 0 : i32
    %c0_i32_0 = arith.constant 0 : i32
    return %arg0, %arg1, %c0_i32 : i32, i32, i32
  }
}

</mosaic_0001>

<llo_original>
// kernel: tpu_custom_call.1
$region0: #{tpu_custom_call.1}
  #allocation0 [shape = 'u32[]', space=smem, size = 0x4, offset = 0x4, fixed_abs, tag = 'smem constant byte address 0x4 - core index']
  #allocation1 [shape = 'u32[144,128]{1,0:T(1,128)}', space=vmem, size = 0x12000, scoped, tag = 'internal scratch']
  %s0 = inlined_call_operand.vmem [shape: f32[2,8,32], index: 0, kind: input, shape index: {}]
  %s1 = inlined_call_operand.vmem [shape: f32[2,32,8], index: 1, kind: input, shape index: {}]
  %s2 = inlined_call_operand.vmem [shape: f32[2,8,32], index: 2, kind: input, shape index: {}]
  %s3 = inlined_call_operand.hbm [shape: f32[2,8,32], index: 3, kind: output, shape index: {0}]
  %s4 = inlined_call_operand.hbm [shape: f32[2,8,8], index: 4, kind: output, shape index: {1}]
  %5 = xla_tuple %s3, %s4
  %s6 = sld [smem:[#allocation0]]
  $region53: #{tpu_custom_call.1} parent=0
    _
  %s8 = ssub.s32 1, %s6
  %s9 = scalar_select 0, %s8, %s6
  $region1: #{tpu_custom_call.1} parent=0
    #allocation2 [shape = 'u8[8192]{0}', space=vmem, size = 0x2000, scoped, tag = 'output window, operand 0']
    #allocation3 [shape = 's32[2]{0}', space=sflag, size = 0x8, scoped, tag = 'scoped memory for tpu_custom_call.1']
    #allocation4 [shape = 'u8[8192]{0}', space=vmem, size = 0x2000, scoped, tag = 'output window, operand 1']
    #allocation5 [shape = 's32[2]{0}', space=sflag, size = 0x8, scoped, tag = 'scoped memory for tpu_custom_call.1']
    %10 = vsyncpa [#allocation3], 0
    %s11 = scalar_lea.sflag [#allocation3], 1
    %12 = vsyncpa %s11, 0
    %13 = vsyncpa [#allocation5], 0
    %s14 = scalar_lea.sflag [#allocation5], 1
    %15 = vsyncpa %s14, 0
    loop: start=0, step=1, limit=4
    $region2: #{tpu_custom_call.1} parent=1 // loop_pre_header
      _
    $region3: #{tpu_custom_call.1} parent=1 // loop_header
      %s17 = sphi 0, %s21
      %p18 = scmp.ge.s32.totalorder %s17, 4
      %s24 = sphi 0, %s36
      %s25 = sphi 0, %s32
      %s26 = sphi 0, %s24
      %s27 = sphi 0, %s25
      %s28 = sphi 0, %s26
      %s29 = sphi 0, %s27
      %s41 = sphi 0, %s43
      %s44 = sphi 0, %s41
      %s45 = sphi 0, %s44
      %s61 = sphi 0, %s45
      %s67 = sphi 0, %s69
      %s70 = sphi 0, %s67
      %s71 = sphi 0, %s70
      %s87 = sphi 0, %s71
      %s93 = sphi 0, %s95
      %s96 = sphi 0, %s93
      %s97 = sphi 0, %s96
      %s113 = sphi 0, %s97
      %s121 = sphi 0, %s123
      %s124 = sphi 0, %s121
      %s125 = sphi 0, %s124
      %s141 = sphi 0, %s125
      %s149 = sphi 0, %s151
      %s152 = sphi 0, %s149
      %s153 = sphi 0, %s152
      %s169 = sphi 0, %s153
    $region4: #{tpu_custom_call.1} parent=1 // loop_header_branch
      %20 = sbr.rel (%p18) target = $region8
    $region5: #{tpu_custom_call.1} parent=1 // loop_body
      %s22 = ssub.s32 %s17, 1
      %s23 = ssub.s32 %s17, 2
      %s30 = sadd.s32 1, %s25
      %p31 = scmp.ge.s32.totalorder %s30, 1
      %s32 = scalar_select %p31, 0, %s30
      %s33 = sadd.s32 1, %s24
      %s34 = scalar_select %p31, %s33, %s24
      %p35 = scmp.ge.s32.totalorder %s34, 2
      %s36 = scalar_select %p35, 0, %s34
      %s37 = ssub.s32 %s24, %s36
      %s38 = ssub.s32 %s25, %s32
      %s39 = sor.u32 %s37, %s38
      %p40 = scmp.eq.s32.totalorder %s39, 0
      %s42 = sadd.s32 %s41, 1
      %s43 = scalar_select %p40, %s41, %s42
      %p46 = pneg %p40
      %p47 = scmp.eq.s32.totalorder %s17, 1
      %p48 = por %p46, %p47
      %p49 = scmp.ne.s32.totalorder %s41, %s44
      %p50 = scmp.eq.s32.totalorder %s17, 0
      %p51 = por %p49, %p50
      %p52 = scmp.ne.s32.totalorder %s41, %s44
      %p53 = scmp.eq.s32.totalorder %s22, 1
      %p54 = por %p52, %p53
      %p55 = scmp.ne.s32.totalorder %s44, %s45
      %p56 = scmp.eq.s32.totalorder %s22, 0
      %p57 = por %p55, %p56
      %p58 = scmp.ne.s32.totalorder %s44, %s45
      %p59 = scmp.eq.s32.totalorder %s23, 1
      %p60 = por %p58, %p59
      %p62 = scmp.ne.s32.totalorder %s45, %s61
      %p63 = scmp.eq.s32.totalorder %s23, 0
      %p64 = por %p62, %p63
      %s65 = ssub.s32 %s24, %s36
      %p66 = scmp.eq.s32.totalorder %s65, 0
      %s68 = sadd.s32 %s67, 1
      %s69 = scalar_select %p66, %s67, %s68
      %p72 = pneg %p66
      %p73 = scmp.eq.s32.totalorder %s17, 1
      %p74 = por %p72, %p73
      %p75 = scmp.ne.s32.totalorder %s67, %s70
      %p76 = scmp.eq.s32.totalorder %s17, 0
      %p77 = por %p75, %p76
      %p78 = scmp.ne.s32.totalorder %s67, %s70
      %p79 = scmp.eq.s32.totalorder %s22, 1
      %p80 = por %p78, %p79
      %p81 = scmp.ne.s32.totalorder %s70, %s71
      %p82 = scmp.eq.s32.totalorder %s22, 0
      %p83 = por %p81, %p82
      %p84 = scmp.ne.s32.totalorder %s70, %s71
      %p85 = scmp.eq.s32.totalorder %s23, 1
      %p86 = por %p84, %p85
      %p88 = scmp.ne.s32.totalorder %s71, %s87
      %p89 = scmp.eq.s32.totalorder %s23, 0
      %p90 = por %p88, %p89
      %s91 = ssub.s32 %s24, %s36
      %p92 = scmp.eq.s32.totalorder %s91, 0
      %s94 = sadd.s32 %s93, 1
      %s95 = scalar_select %p92, %s93, %s94
      %p98 = pneg %p92
      %p99 = scmp.eq.s32.totalorder %s17, 1
      %p100 = por %p98, %p99
      %p101 = scmp.ne.s32.totalorder %s93, %s96
      %p102 = scmp.eq.s32.totalorder %s17, 0
      %p103 = por %p101, %p102
      %p104 = scmp.ne.s32.totalorder %s93, %s96
      %p105 = scmp.eq.s32.totalorder %s22, 1
      %p106 = por %p104, %p105
      %p107 = scmp.ne.s32.totalorder %s96, %s97
      %p108 = scmp.eq.s32.totalorder %s22, 0
      %p109 = por %p107, %p108
      %p110 = scmp.ne.s32.totalorder %s96, %s97
      %p111 = scmp.eq.s32.totalorder %s23, 1
      %p112 = por %p110, %p111
      %p114 = scmp.ne.s32.totalorder %s97, %s113
      %p115 = scmp.eq.s32.totalorder %s23, 0
      %p116 = por %p114, %p115
      %s117 = ssub.s32 %s24, %s36
      %s118 = ssub.s32 %s25, %s32
      %s119 = sor.u32 %s117, %s118
      %p120 = scmp.eq.s32.totalorder %s119, 0
      %s122 = sadd.s32 %s121, 1
      %s123 = scalar_select %p120, %s121, %s122
      %p126 = pneg %p120
      %p127 = scmp.eq.s32.totalorder %s17, 1
      %p128 = por %p126, %p127
      %p129 = scmp.ne.s32.totalorder %s121, %s124
      %p130 = scmp.eq.s32.totalorder %s17, 0
      %p131 = por %p129, %p130
      %p132 = scmp.ne.s32.totalorder %s121, %s124
      %p133 = scmp.eq.s32.totalorder %s22, 1
      %p134 = por %p132, %p133
      %p135 = scmp.ne.s32.totalorder %s124, %s125
      %p136 = scmp.eq.s32.totalorder %s22, 0
      %p137 = por %p135, %p136
      %p138 = scmp.ne.s32.totalorder %s124, %s125
      %p139 = scmp.eq.s32.totalorder %s23, 1
      %p140 = por %p138, %p139
      %p142 = scmp.ne.s32.totalorder %s125, %s141
      %p143 = scmp.eq.s32.totalorder %s23, 0
      %p144 = por %p142, %p143
      %s145 = ssub.s32 %s24, %s36
      %s146 = ssub.s32 %s25, %s32
      %s147 = sor.u32 %s145, %s146
      %p148 = scmp.eq.s32.totalorder %s147, 0
      %s150 = sadd.s32 %s149, 1
      %s151 = scalar_select %p148, %s149, %s150
      %p154 = pneg %p148
      %p155 = scmp.eq.s32.totalorder %s17, 1
      %p156 = por %p154, %p155
      %p157 = scmp.ne.s32.totalorder %s149, %s152
      %p158 = scmp.eq.s32.totalorder %s17, 0
      %p159 = por %p157, %p158
      %p160 = scmp.ne.s32.totalorder %s149, %s152
      %p161 = scmp.eq.s32.totalorder %s22, 1
      %p162 = por %p160, %p161
      %p163 = scmp.ne.s32.totalorder %s152, %s153
      %p164 = scmp.eq.s32.totalorder %s22, 0
      %p165 = por %p163, %p164
      %p166 = scmp.ne.s32.totalorder %s152, %s153
      %p167 = scmp.eq.s32.totalorder %s23, 1
      %p168 = por %p166, %p167
      %p170 = scmp.ne.s32.totalorder %s153, %s169
      %p171 = scmp.eq.s32.totalorder %s23, 0
      %p172 = por %p170, %p171
      %p173 = scmp.le.s32.totalorder 1, %s17
      %p174 = scmp.lt.s32.totalorder %s17, 3
      %p175 = pnand %p173, %p174
      %p176 = pneg %p175
      // Predicated region
      $region9: #{tpu_custom_call.1} parent=5 // pred_check
        _
      $region10: #{tpu_custom_call.1} parent=5 // pred_check_branch
        %178 = sbr.rel (%p175) target = $region12
      $region11: #{tpu_custom_call.1} parent=5 // pred_region
        %s179 = ssub.s32 %s17, 1
      $region12: #{tpu_custom_call.1} parent=5 // pred_fallthru
        _
      %p180 = scmp.lt.s32.totalorder %s17, 2
      // Predicated region
      $region13: #{tpu_custom_call.1} parent=5 // pred_check
        %p181 = pneg %p180
      $region14: #{tpu_custom_call.1} parent=5 // pred_check_branch
        %183 = sbr.rel (%p181) target = $region16
      $region15: #{tpu_custom_call.1} parent=5 // pred_region
        // Predicated region
        $region17: #{tpu_custom_call.1} parent=15 // pred_check
          %p184 = pneg %p51
        $region18: #{tpu_custom_call.1} parent=15 // pred_check_branch
          %186 = sbr.rel (%p184) target = $region20
        $region19: #{tpu_custom_call.1} parent=15 // pred_region
          %p187 = scmp.lt.s32.totalorder %s24, 1
          %s188 = scalar_select %p187, %s24, 1
          %p189 = scmp.lt.s32.totalorder %s25, 0
          %s190 = scalar_select %p189, %s25, 0
          %s191 = sadd.s32 %s190, %s188
          %s192 = smul.addr %s191, 8
          %s193 = scalar_lea.vmem %s0, %s192
        $region20: #{tpu_custom_call.1} parent=15 // pred_fallthru
          _
        // Predicated region
        $region21: #{tpu_custom_call.1} parent=15 // pred_check
          %p194 = pneg %p77
        $region22: #{tpu_custom_call.1} parent=15 // pred_check_branch
          %196 = sbr.rel (%p194) target = $region24
        $region23: #{tpu_custom_call.1} parent=15 // pred_region
          %p197 = scmp.lt.s32.totalorder %s24, 1
          %s198 = scalar_select %p197, %s24, 1
          %s199 = smul.addr %s198, 4
          %s200 = smul.addr %s199, 8
          %s201 = scalar_lea.vmem %s1, %s200
        $region24: #{tpu_custom_call.1} parent=15 // pred_fallthru
          _
        // Predicated region
        $region25: #{tpu_custom_call.1} parent=15 // pred_check
          %p202 = pneg %p103
        $region26: #{tpu_custom_call.1} parent=15 // pred_check_branch
          %204 = sbr.rel (%p202) target = $region28
        $region27: #{tpu_custom_call.1} parent=15 // pred_region
          %p205 = scmp.lt.s32.totalorder %s24, 1
          %s206 = scalar_select %p205, %s24, 1
          %s207 = smul.addr %s206, 8
          %s208 = scalar_lea.vmem %s2, %s207
        $region28: #{tpu_custom_call.1} parent=15 // pred_fallthru
          _
      $region16: #{tpu_custom_call.1} parent=5 // pred_fallthru
        _
      %p209 = scmp.le.s32.totalorder 1, %s17
      %p210 = scmp.lt.s32.totalorder %s17, 3
      %p211 = pnand %p209, %p210
      %p212 = pneg %p211
      // Predicated region
      $region29: #{tpu_custom_call.1} parent=5 // pred_check
        _
      $region30: #{tpu_custom_call.1} parent=5 // pred_check_branch
        %214 = sbr.rel (%p211) target = $region32
      $region31: #{tpu_custom_call.1} parent=5 // pred_region
        %s215 = ssub.s32 %s17, 1
        %p216 = scmp.lt.s32.totalorder %s26, 1
        %s217 = scalar_select %p216, %s26, 1
        %p218 = scmp.lt.s32.totalorder %s27, 0
        %s219 = scalar_select %p218, %s27, 0
        %s220 = sadd.s32 %s219, %s217
        %s221 = smul.addr %s220, 8
        %s222 = scalar_lea.vmem %s0, %s221
        %p223 = pneg %p57
        %p224 = pneg %p54
        %p225 = scmp.lt.s32.totalorder %s26, 1
        %s226 = scalar_select %p225, %s26, 1
        %s227 = smul.addr %s226, 4
        %s228 = smul.addr %s227, 8
        %s229 = scalar_lea.vmem %s1, %s228
        %p230 = pneg %p83
        %p231 = pneg %p80
        %p232 = scmp.lt.s32.totalorder %s26, 1
        %s233 = scalar_select %p232, %s26, 1
        %s234 = smul.addr %s233, 8
        %s235 = scalar_lea.vmem %s2, %s234
        %p236 = pneg %p109
        %p237 = pneg %p106
        %p238 = pneg %p137
        %p239 = pneg %p134
        %s240 = sand.u32 %s124, 1
        %s241 = scalar_lea.sflag [#allocation3], %s240
        %s242 = sand.u32 %s124, 1
        %s243 = smul.addr %s242, 8
        %s244 = scalar_lea.vmem [#allocation2], %s243
        %p245 = pneg %p165
        %p246 = pneg %p162
        %s247 = sand.u32 %s152, 1
        %s248 = scalar_lea.sflag [#allocation5], %s247
        %s249 = sand.u32 %s152, 1
        %s250 = smul.addr %s249, 8
        %s251 = scalar_lea.vmem [#allocation4], %s250
        %p252 = scmp.lt.s32.totalorder %s26, 1
        %s253 = scalar_select %p252, %s26, 1
        %p254 = scmp.lt.s32.totalorder %s27, 0
        %s255 = scalar_select %p254, %s27, 0
        %s256 = sadd.s32 %s255, %s253
        %s257 = smul.addr %s256, 8
        %s258 = scalar_lea.vmem %s0, %s257
        %p259 = scmp.lt.s32.totalorder %s26, 1
        %s260 = scalar_select %p259, %s26, 1
        %s261 = smul.addr %s260, 4
        %s262 = smul.addr %s261, 8
        %s263 = scalar_lea.vmem %s1, %s262
        %p264 = scmp.lt.s32.totalorder %s26, 1
        %s265 = scalar_select %p264, %s26, 1
        %s266 = smul.addr %s265, 8
        %s267 = scalar_lea.vmem %s2, %s266
        %v268 = vld [vmem:[%s258] sm:$0xff]
        %v269 = vld [vmem:[%s263] sm:$0xff]
        %v270 = vld [vmem:[%s263 + $0x8] sm:$0xff]
        %v271 = vld [vmem:[%s263 + $0x10] sm:$0xff]
        %v272 = vld [vmem:[%s263 + $0x18] sm:$0xff]
        %v273 = vld [vmem:[%s267] sm:$0xff]
        %vm274 = vcmask 261120
        %v276 = vsel %vm274, %v268, 0
        %278 = vmatprep.subr.mxu0 0.0
        %279 = vmatpush1.msra.mxu0 0.0
        %280 = vmatprep.subr.mxu0 0.0
        %281 = vmatpush1.msra.mxu0 0.0
        %282 = vmatprep.subr.mxu0 0.0
        %283 = vmatpush1.msra.mxu0 0.0
        %284 = vmatprep.subr.mxu0 0.0
        %285 = vmatpush1.msra.mxu0 0.0
        %286 = vmatprep.subr.mxu0 0.0
        %287 = vmatpush1.msra.mxu0 0.0
        %288 = vmatprep.subr.mxu0 0.0
        %289 = vmatpush1.msra.mxu0 0.0
        %290 = vmatprep.subr.mxu0 0.0
        %291 = vmatpush1.msra.mxu0 0.0
        %292 = vmatprep.subr.mxu0 0.0
        %293 = vmatpush1.msra.mxu0 0.0
        %294 = vmatprep.subr.mxu0 0.0
        %295 = vmatpush1.msra.mxu0 0.0
        %296 = vmatprep.subr.mxu0 0.0
        %297 = vmatpush1.msra.mxu0 0.0
        %298 = vmatprep.subr.mxu0 0.0
        %299 = vmatpush1.msra.mxu0 0.0
        %300 = vmatprep.subr.mxu0 0.0
        %301 = vmatpush1.msra.mxu0 0.0
        %302 = vmatprep.subr.mxu0 0.0
        %303 = vmatpush1.msra.mxu0 %v272
        %304 = vmatprep.subr.mxu0 0.0
        %305 = vmatpush1.msra.mxu0 %v271
        %306 = vmatprep.subr.mxu0 0.0
        %307 = vmatpush1.msra.mxu0 %v270
        %308 = vmatprep.subr.mxu0 0.0
        %309 = vmatpush1.msra.mxu0 %v269
        %310 = vmatprep.subr.mxu0 0.0
        %311 = vmatpush2.msra.mxu0 0.0
        %312 = vmatprep.subr.mxu0 0.0
        %313 = vmatpush2.msra.mxu0 0.0
        %314 = vmatprep.subr.mxu0 0.0
        %315 = vmatpush2.msra.mxu0 0.0
        %316 = vmatprep.subr.mxu0 0.0
        %317 = vmatpush2.msra.mxu0 0.0
        %318 = vmatprep.subr.mxu0 0.0
        %319 = vmatpush2.msra.mxu0 0.0
        %320 = vmatprep.subr.mxu0 0.0
        %321 = vmatpush2.msra.mxu0 0.0
        %322 = vmatprep.subr.mxu0 0.0
        %323 = vmatpush2.msra.mxu0 0.0
        %324 = vmatprep.subr.mxu0 0.0
        %325 = vmatpush2.msra.mxu0 0.0
        %326 = vmatprep.subr.mxu0 0.0
        %327 = vmatpush2.msra.mxu0 0.0
        %328 = vmatprep.subr.mxu0 0.0
        %329 = vmatpush2.msra.mxu0 0.0
        %330 = vmatprep.subr.mxu0 0.0
        %331 = vmatpush2.msra.mxu0 0.0
        %332 = vmatprep.subr.mxu0 0.0
        %333 = vmatpush2.msra.mxu0 0.0
        %334 = vmatprep.subr.mxu0 0.0
        %335 = vmatpush2.msra.mxu0 0.0
        %336 = vmatprep.subr.mxu0 0.0
        %337 = vmatpush2.msra.mxu0 0.0
        %338 = vmatprep.subr.mxu0 0.0
        %339 = vmatpush2.msra.mxu0 0.0
        %340 = vmatprep.subr.mxu0 0.0
        %341 = vmatpush2.msra.mxu0 0.0
        %342 = vmatprep.mubr.f32.mxu0 0.0
        %343 = vmatmul.mubr.f32.gmra.mxu0 %v276
        %v344 = vpop.f32.mrf.mxu0
        %v345 = vadd.f32 0.0, %v344
        %v346 = vpop.f32.mrf.mxu0
        %347 = vdwg.mxu0
        %vm348 = vcmask 64512
        %v349 = vsel %vm348, %v345, -inf
        %350 = vmax.xlane.f32.xlu0 %v349
        %v351 = vpop.xlane.xlu0 %350
        %v352 = vsub.f32 %v345, %v351
        %v353 = vmul.f32 %v352, 1.442695
        %v354 = vpow.pop %v353
        %v355 = vsel %vm348, %v354, 0.0
        %356 = vadd.xlane.f32.xlu0 %v355
        %v357 = vpop.xlane.xlu0 %356
        %v358 = vrcp.pop %v357
        %v359 = vmul.f32 %v354, %v358
        %360 = vst.msk [vmem:[%s251] sm:$0xff] %vm348, %v359
        %v362 = vsel %vm348, %v359, 0
        %364 = vmatprep.subr.mxu0 0.0
        %365 = vmatpush1.msra.mxu0 0.0
        %366 = vmatprep.subr.mxu0 0.0
        %367 = vmatpush1.msra.mxu0 0.0
        %368 = vmatprep.subr.mxu0 0.0
        %369 = vmatpush1.msra.mxu0 0.0
        %370 = vmatprep.subr.mxu0 0.0
        %371 = vmatpush1.msra.mxu0 0.0
        %372 = vmatprep.subr.mxu0 0.0
        %373 = vmatpush1.msra.mxu0 0.0
        %374 = vmatprep.subr.mxu0 0.0
        %375 = vmatpush1.msra.mxu0 0.0
        %376 = vmatprep.subr.mxu0 0.0
        %377 = vmatpush1.msra.mxu0 0.0
        %378 = vmatprep.subr.mxu0 0.0
        %379 = vmatpush1.msra.mxu0 0.0
        %380 = vmatprep.subr.mxu0 0.0
        %381 = vmatpush1.msra.mxu0 0.0
        %382 = vmatprep.subr.mxu0 0.0
        %383 = vmatpush1.msra.mxu0 0.0
        %384 = vmatprep.subr.mxu0 0.0
        %385 = vmatpush1.msra.mxu0 0.0
        %386 = vmatprep.subr.mxu0 0.0
        %387 = vmatpush1.msra.mxu0 0.0
        %388 = vmatprep.subr.mxu0 0.0
        %389 = vmatpush1.msra.mxu0 0.0
        %390 = vmatprep.subr.mxu0 0.0
        %391 = vmatpush1.msra.mxu0 0.0
        %392 = vmatprep.subr.mxu0 0.0
        %393 = vmatpush1.msra.mxu0 0.0
        %394 = vmatprep.subr.mxu0 0.0
        %395 = vmatpush1.msra.mxu0 %v273
        %396 = vmatprep.subr.mxu0 0.0
        %397 = vmatpush2.msra.mxu0 0.0
        %398 = vmatprep.subr.mxu0 0.0
        %399 = vmatpush2.msra.mxu0 0.0
        %400 = vmatprep.subr.mxu0 0.0
        %401 = vmatpush2.msra.mxu0 0.0
        %402 = vmatprep.subr.mxu0 0.0
        %403 = vmatpush2.msra.mxu0 0.0
        %404 = vmatprep.subr.mxu0 0.0
        %405 = vmatpush2.msra.mxu0 0.0
        %406 = vmatprep.subr.mxu0 0.0
        %407 = vmatpush2.msra.mxu0 0.0
        %408 = vmatprep.subr.mxu0 0.0
        %409 = vmatpush2.msra.mxu0 0.0
        %410 = vmatprep.subr.mxu0 0.0
        %411 = vmatpush2.msra.mxu0 0.0
        %412 = vmatprep.subr.mxu0 0.0
        %413 = vmatpush2.msra.mxu0 0.0
        %414 = vmatprep.subr.mxu0 0.0
        %415 = vmatpush2.msra.mxu0 0.0
        %416 = vmatprep.subr.mxu0 0.0
        %417 = vmatpush2.msra.mxu0 0.0
        %418 = vmatprep.subr.mxu0 0.0
        %419 = vmatpush2.msra.mxu0 0.0
        %420 = vmatprep.subr.mxu0 0.0
        %421 = vmatpush2.msra.mxu0 0.0
        %422 = vmatprep.subr.mxu0 0.0
        %423 = vmatpush2.msra.mxu0 0.0
        %424 = vmatprep.subr.mxu0 0.0
        %425 = vmatpush2.msra.mxu0 0.0
        %426 = vmatprep.subr.mxu0 0.0
        %427 = vmatpush2.msra.mxu0 0.0
        %428 = vmatprep.mubr.f32.mxu0 0.0
        %429 = vmatmul.mubr.f32.gmra.mxu0 %v362
        %v430 = vpop.f32.mrf.mxu0
        %v431 = vadd.f32 0.0, %v430
        %v432 = vpop.f32.mrf.mxu0
        %433 = vdwg.mxu0
        %434 = vst.msk [vmem:[%s244] sm:$0xff] %vm274, %v431
        %s435 = sand.u32 %s124, 1
        %s436 = scalar_lea.sflag [#allocation3], %s435
        %s437 = sand.u32 %s124, 1
        %s438 = smul.addr %s437, 8
        %s439 = scalar_lea.vmem [#allocation2], %s438
        %s440 = sand.u32 %s152, 1
        %s441 = scalar_lea.sflag [#allocation5], %s440
        %s442 = sand.u32 %s152, 1
        %s443 = smul.addr %s442, 8
        %s444 = scalar_lea.vmem [#allocation4], %s443
        // Predicated region
        $region33: #{tpu_custom_call.1} parent=31 // pred_check
          %p445 = pneg %p134
        $region34: #{tpu_custom_call.1} parent=31 // pred_check_branch
          %447 = sbr.rel (%p445) target = $region36
        $region35: #{tpu_custom_call.1} parent=31 // pred_region
          %s449 = ssub.s32 128, 128
          %450 = vsyncadd %s436, %s449
          %s451 = sadd.s32 %s27, %s26
          %s452 = smul.addr %s451, 128
          %s453 = scalar_lea.hbm %s3, %s452
          %s455 = sshll.u32 %s439, 4
          %s456 = int_to_ptr.vmem [resolvable:$true] %s455
          %458 = dma.vmem_to_hbm [thread:$0]  %s456, 128, %s453, %s436
        $region36: #{tpu_custom_call.1} parent=31 // pred_fallthru
          _
        // Predicated region
        $region37: #{tpu_custom_call.1} parent=31 // pred_check
          %p459 = pneg %p162
        $region38: #{tpu_custom_call.1} parent=31 // pred_check_branch
          %461 = sbr.rel (%p459) target = $region40
        $region39: #{tpu_custom_call.1} parent=31 // pred_region
          %s463 = ssub.s32 128, 128
          %464 = vsyncadd %s441, %s463
          %s465 = sadd.s32 %s27, %s26
          %s466 = smul.addr %s465, 128
          %s467 = scalar_lea.hbm %s4, %s466
          %s469 = sshll.u32 %s444, 4
          %s470 = int_to_ptr.vmem [resolvable:$true] %s469
          %472 = dma.vmem_to_hbm [thread:$0]  %s470, 128, %s467, %s441
        $region40: #{tpu_custom_call.1} parent=31 // pred_fallthru
          _
      $region32: #{tpu_custom_call.1} parent=5 // pred_fallthru
        _
      %p473 = scmp.le.s32.totalorder 2, %s17
      // Predicated region
      $region41: #{tpu_custom_call.1} parent=5 // pred_check
        %p474 = pneg %p473
      $region42: #{tpu_custom_call.1} parent=5 // pred_check_branch
        %476 = sbr.rel (%p474) target = $region44
      $region43: #{tpu_custom_call.1} parent=5 // pred_region
        %s477 = ssub.s32 %s17, 2
        // Predicated region
        $region45: #{tpu_custom_call.1} parent=43 // pred_check
          %p478 = pneg %p140
        $region46: #{tpu_custom_call.1} parent=43 // pred_check_branch
          %480 = sbr.rel (%p478) target = $region48
        $region47: #{tpu_custom_call.1} parent=43 // pred_region
          %s481 = sand.u32 %s125, 1
          %s482 = scalar_lea.sflag [#allocation3], %s481
          %s483 = sand.u32 %s125, 1
          %s484 = smul.addr %s483, 8
          %s485 = scalar_lea.vmem [#allocation2], %s484
          %486 = dma.done %s482, 128
        $region48: #{tpu_custom_call.1} parent=43 // pred_fallthru
          _
        // Predicated region
        $region49: #{tpu_custom_call.1} parent=43 // pred_check
          %p487 = pneg %p168
        $region50: #{tpu_custom_call.1} parent=43 // pred_check_branch
          %489 = sbr.rel (%p487) target = $region52
        $region51: #{tpu_custom_call.1} parent=43 // pred_region
          %s490 = sand.u32 %s153, 1
          %s491 = scalar_lea.sflag [#allocation5], %s490
          %s492 = sand.u32 %s153, 1
          %s493 = smul.addr %s492, 8
          %s494 = scalar_lea.vmem [#allocation4], %s493
          %495 = dma.done %s491, 128
        $region52: #{tpu_custom_call.1} parent=43 // pred_fallthru
          _
      $region44: #{tpu_custom_call.1} parent=5 // pred_fallthru
        _
    $region6: #{tpu_custom_call.1} parent=1 // loop_footer
      %s21 = sadd.s32 1, %s17
    $region7: #{tpu_custom_call.1} parent=1 // loop_footer_branch
      %16 = sbr.rel target = $region3
    $region8: #{tpu_custom_call.1} parent=1 // loop_exit
      _
    %496 = vsyncpa [#allocation3], 1
    %s497 = scalar_lea.sflag [#allocation3], 1
    %498 = vsyncpa %s497, 1
    %499 = vsyncpa [#allocation5], 1
    %s500 = scalar_lea.sflag [#allocation5], 1
    %501 = vsyncpa %s500, 1

</llo_original>
